<compile_context>
chip_gen: v5e
topology: v5e:2x2
jax: 0.10.0
libtpu: 0.0.40
codegen_flags: <defaults>
</compile_context>

<pallas_src>
import functools
import math

import jax
import jax.numpy as jnp
from jax.experimental import pallas as pl
from jax.experimental.pallas import tpu as pltpu


def _round_up(x, m):
    return (x + m - 1) // m * m


def _pick_tile(dim, pref, unit):
    """Largest multiple of `unit` <= min(pref, dim) that divides `dim` (dim % unit == 0)."""
    t = max(unit, (min(pref, dim) // unit) * unit)
    while dim % t:
        t -= unit
    return t


# ---------------------------------------------------------------------------
# Tiled linear: y = x @ w + b      (x: [M, K], w: [Kp, Np] pre-padded, b: [1, Np])
# ---------------------------------------------------------------------------
def _linear_kernel(x_ref, w_ref, b_ref, o_ref, acc_ref, *, mxu_dtype):
    k = pl.program_id(2)

    @pl.when(k == 0)
    def _():
        acc_ref[...] = jnp.zeros_like(acc_ref)

    # MXU operands in mxu_dtype (bf16 in perf config), f32 accumulation.
    acc_ref[...] += jnp.dot(x_ref[...].astype(mxu_dtype),
                            w_ref[...].astype(mxu_dtype),
                            preferred_element_type=jnp.float32)

    @pl.when(k == pl.num_programs(2) - 1)
    def _():
        o_ref[...] = (acc_ref[...] + b_ref[...].astype(jnp.float32)).astype(o_ref.dtype)


def linear_pallas(x2d, w_pad, b_pad, *, n_out, mxu_dtype=None,
                  tm_pref=512, tn_pref=512, tk_pref=512, trim=True):
    """x2d: [M, K] activations; w_pad: [Kp, Np] lane-padded weights; b_pad: [1, Np].

    Returns [M, n_out] if trim else the padded [Mp, Np] result.
    """
    M, K = x2d.shape
    Kp, Np = w_pad.shape
    assert Kp >= K and Np >= n_out
    mxu = mxu_dtype or x2d.dtype

    tm = min(tm_pref, _round_up(M, 8))
    tk = _pick_tile(Kp, tk_pref, 128)
    tn = _pick_tile(Np, tn_pref, 128)
    Mp = _round_up(M, tm)

    # Only activations are padded at runtime; weights/bias were padded once at init.
    xp = x2d if (Mp == M and Kp == K) else jnp.pad(x2d, ((0, Mp - M), (0, Kp - K)))

    cost = pl.CostEstimate(
        flops=2 * Mp * Kp * Np,
        transcendentals=0,
        bytes_accessed=x2d.dtype.itemsize * (Mp * Kp + Kp * Np + Mp * Np + Np),
    )

    out = pl.pallas_call(
        functools.partial(_linear_kernel, mxu_dtype=mxu),
        out_shape=jax.ShapeDtypeStruct((Mp, Np), x2d.dtype),
        grid_spec=pltpu.PrefetchScalarGridSpec(
            num_scalar_prefetch=0,
            grid=(Mp // tm, Np // tn, Kp // tk),
            in_specs=[
                pl.BlockSpec((tm, tk), lambda i, j, k: (i, k)),
                pl.BlockSpec((tk, tn), lambda i, j, k: (k, j)),
                pl.BlockSpec((1, tn), lambda i, j, k: (0, j)),
            ],
            out_specs=pl.BlockSpec((tm, tn), lambda i, j, k: (i, j)),
            scratch_shapes=[pltpu.VMEM((tm, tn), jnp.float32)],
        ),
        compiler_params=pltpu.CompilerParams(
            dimension_semantics=("parallel", "parallel", "arbitrary"),
            vmem_limit_bytes=48 * 1024 * 1024),
        cost_estimate=cost,
    )(xp, w_pad, b_pad)

    if trim:
        return out[:M, :n_out] if (Mp != M or Np != n_out) else out
    return out


# ---------------------------------------------------------------------------
# Causal flash attention, reading q/k/v straight from the fused QKV tensor.
#   qkv: [B, T, G, D] with G >= 3*H; plane g = h is q, H + h is k, 2H + h is v.
#   output: [B, T, H, D]  (head-concat layout, so the downstream reshape is free)
# ---------------------------------------------------------------------------
def _attn_kernel(q_ref, k_ref, v_ref, o_ref, m_sc, l_sc, acc_sc, *,
                 scale, t, mxu_dtype):
    qi = pl.program_id(2)
    ki = pl.program_id(3)

    @pl.when(ki == 0)
    def _():
        m_sc[...] = jnp.full_like(m_sc, -jnp.inf)
        l_sc[...] = jnp.zeros_like(l_sc)
        acc_sc[...] = jnp.zeros_like(acc_sc)

    def flash_step(apply_mask):
        # Scale in f32 (cheap: tq*D elements), then feed mxu_dtype operands to the MXU.
        q = (q_ref[...].astype(jnp.float32) * scale).astype(mxu_dtype)
        k = k_ref[...].astype(mxu_dtype)
        s = jax.lax.dot_general(q, k, (((1,), (1,)), ((), ())),
                                preferred_element_type=jnp.float32)      # (t, t)
        if apply_mask:
            q_pos = qi * t + jax.lax.broadcasted_iota(jnp.int32, s.shape, 0)
            k_pos = ki * t + jax.lax.broadcasted_iota(jnp.int32, s.shape, 1)
            s = jnp.where(q_pos >= k_pos, s, -1e30)

        m_prev = m_sc[...]
        m_new = jnp.maximum(m_prev, s.max(-1, keepdims=True))
        alpha = jnp.exp(m_prev - m_new)
        p = jnp.exp(s - m_new)
        l_sc[...] = alpha * l_sc[...] + p.sum(-1, keepdims=True)
        acc_sc[...] = alpha * acc_sc[...] + jnp.dot(
            p.astype(mxu_dtype), v_ref[...].astype(mxu_dtype),
            preferred_element_type=jnp.float32)
        m_sc[...] = m_new

    # Strictly-below-diagonal kv tiles are fully visible: no mask arithmetic.
    @pl.when(ki < qi)
    def _():
        flash_step(apply_mask=False)

    # Only the diagonal tile needs the causal mask.
    @pl.when(ki == qi)
    def _():
        flash_step(apply_mask=True)

    # ki > qi: fully masked -> no compute; the clamped k/v index_maps also mean no
    # K/V DMA is issued for these grid steps.

    @pl.when(ki == pl.num_programs(3) - 1)
    def _():
        o_ref[...] = (acc_sc[...] * pl.reciprocal(l_sc[...], approx=True)
                      ).astype(o_ref.dtype)


def causal_attention_pallas(qkv, *, n_head, head_size, scale,
                            t_pref=512, mxu_dtype=None):
    B, T, G, D = qkv.shape
    H = n_head
    assert D == head_size and G >= 3 * H
    mxu = mxu_dtype or qkv.dtype

    t = min(t_pref, _round_up(T, 8))       # shared q/kv tile (needed for the min clamp)
    Tp = _round_up(T, t)
    if Tp != T:
        qkv = jnp.pad(qkv, ((0, 0), (0, Tp - T), (0, 0), (0, 0)))
    nt = Tp // t

    q_map = lambda b, h, qi, ki: (b, qi, h, 0)
    # Clamp ki to qi: fully-masked (above-diagonal) steps reuse the previous block
    # index, so Pallas does not re-DMA K/V tiles that will be skipped.
    k_map = lambda b, h, qi, ki: (b, jnp.minimum(ki, qi), H + h, 0)
    v_map = lambda b, h, qi, ki: (b, jnp.minimum(ki, qi), 2 * H + h, 0)
    o_map = lambda b, h, qi, ki: (b, qi, h, 0)

    blk = (None, t, None, D)   # None == squeezed dims -> kernel refs are 2-D (t, D)

    n_steps = nt * (nt + 1) // 2           # executed (non-skipped) kv steps per (b, h, *)
    cost = pl.CostEstimate(
        flops=4 * B * H * n_steps * t * t * D,
        transcendentals=B * H * n_steps * t * t,
        bytes_accessed=qkv.dtype.itemsize * B * H * t * D * (2 * nt + 2 * n_steps),
    )

    out = pl.pallas_call(
        functools.partial(_attn_kernel, scale=scale, t=t, mxu_dtype=mxu),
        out_shape=jax.ShapeDtypeStruct((B, Tp, H, D), qkv.dtype),
        grid_spec=pltpu.PrefetchScalarGridSpec(
            num_scalar_prefetch=0,
            grid=(B, H, nt, nt),
            in_specs=[pl.BlockSpec(blk, q_map),
                      pl.BlockSpec(blk, k_map),
                      pl.BlockSpec(blk, v_map)],
            out_specs=pl.BlockSpec(blk, o_map),
            scratch_shapes=[
                pltpu.VMEM((t, 1), jnp.float32),   # running max
                pltpu.VMEM((t, 1), jnp.float32),   # running denominator
                pltpu.VMEM((t, D), jnp.float32),   # output accumulator
            ],
        ),
        compiler_params=pltpu.CompilerParams(
            dimension_semantics=("parallel", "parallel", "parallel", "arbitrary"),
            vmem_limit_bytes=48 * 1024 * 1024),
        cost_estimate=cost,
    )(qkv, qkv, qkv)

    return out[:, :T] if Tp != T else out


# ---------------------------------------------------------------------------
# Full MultiHeadAttention forward
# ---------------------------------------------------------------------------
def multi_head_attention(x, padded_params, *, n_head, head_size,
                         mxu_dtype=jnp.bfloat16):
    B, T, C = x.shape
    H, D = n_head, head_size
    x2d = x.reshape(B * T, C)

    # Fused q/k/v projection for all heads.  Keep the lane-padded output and
    # reinterpret it as (B, T, G, D) (no HBM slice) when possible; the attention
    # BlockSpecs select the plane/head directly, so no transposes are needed.
    qkv_pad = linear_pallas(x2d, padded_params['w_qkv'], padded_params['b_qkv'],
                            n_out=3 * H * D, mxu_dtype=mxu_dtype, trim=False)
    Mp, Np = qkv_pad.shape
    if Mp == B * T and Np % D == 0:
        qkv = qkv_pad.reshape(B, T, Np // D, D)
    else:
        qkv = qkv_pad[:B * T, :3 * H * D].reshape(B, T, 3 * H, D)

    scale = C ** (-0.5)  # PyTorch module scales by C**-0.5 (n_embd), not head_size.
    attn = causal_attention_pallas(qkv, n_head=H, head_size=D, scale=scale,
                                   mxu_dtype=mxu_dtype)            # [B, T, H, D]
    attn2d = attn.reshape(B * T, H * D)                             # free reshape

    out2d = linear_pallas(attn2d, padded_params['w_proj'], padded_params['b_proj'],
                          n_out=C, mxu_dtype=mxu_dtype, trim=True)
    # TODO(synk): dropout after the projection is inference-mode identity.
    return out2d.reshape(B, T, C)


# ---------------------------------------------------------------------------
# Params (logical + lane-padded) and pure-JAX reference (mirrors PyTorch per-head math)
# ---------------------------------------------------------------------------
def init_mha_params(key, n_embd, n_head, head_size, bias=True, dtype=jnp.float32):
    C, H, D = n_embd, n_head, head_size
    k1, k2, k3, k4 = jax.random.split(key, 4)
    bound = 1.0 / math.sqrt(C)
    w_qkv = jax.random.uniform(k1, (C, 3 * H * D), dtype, -bound, bound)
    b_qkv = (jax.random.uniform(k2, (3 * H * D,), dtype, -bound, bound)
             if bias else jnp.zeros((3 * H * D,), dtype))
    bound_p = 1.0 / math.sqrt(H * D)
    w_proj = jax.random.uniform(k3, (H * D, C), dtype, -bound_p, bound_p)
    b_proj = jax.random.uniform(k4, (C,), dtype, -bound_p, bound_p)
    return {'w_qkv': w_qkv, 'b_qkv': b_qkv, 'w_proj': w_proj, 'b_proj': b_proj}


def _pad_weight(w, b):
    K, N = w.shape
    Kp, Np = _round_up(K, 128), _round_up(N, 128)
    wp = w if (Kp == K and Np == N) else jnp.pad(w, ((0, Kp - K), (0, Np - N)))
    bp = (b if Np == N else jnp.pad(b, (0, Np - N))).reshape(1, Np)
    return wp, bp


def prepare_params(params):
    """Pad weights/biases to lane-aligned shapes once, so the forward only pads activations."""
    w_qkv, b_qkv = _pad_weight(params['w_qkv'], params['b_qkv'])
    w_proj, b_proj = _pad_weight(params['w_proj'], params['b_proj'])
    return {'w_qkv': w_qkv, 'b_qkv': b_qkv, 'w_proj': w_proj, 'b_proj': b_proj}


def mha_reference(x, params, *, n_head, head_size):
    B, T, C = x.shape
    H, D = n_head, head_size
    w_qkv, b_qkv = params['w_qkv'], params['b_qkv']
    scale = C ** (-0.5)
    mask = jnp.tril(jnp.ones((T, T), dtype=bool))
    outs = []
    for h in range(H):
        wq, bq = w_qkv[:, h * D:(h + 1) * D], b_qkv[h * D:(h + 1) * D]
        wk, bk = (w_qkv[:, H * D + h * D:H * D + (h + 1) * D],
                  b_qkv[H * D + h * D:H * D + (h + 1) * D])
        wv, bv = (w_qkv[:, 2 * H * D + h * D:2 * H * D + (h + 1) * D],
                  b_qkv[2 * H * D + h * D:2 * H * D + (h + 1) * D])
        q = x @ wq + bq
        k = x @ wk + bk
        v = x @ wv + bv
        wei = (q @ jnp.swapaxes(k, -1, -2)) * scale
        wei = jnp.where(mask[None], wei, -jnp.inf)
        wei = jax.nn.softmax(wei, axis=-1)
        outs.append(wei @ v)
    cat = jnp.concatenate(outs, axis=-1)
    return cat @ params['w_proj'] + params['b_proj']


if __name__ == "__main__":
    key = jax.random.PRNGKey(0)
    kx, kp = jax.random.split(key)

    batch, seq, n_embd, n_head = 2, 8, 32, 4
    head_size = n_embd // n_head

    x = jax.random.normal(kx, (batch, seq, n_embd), dtype=jnp.float32)
    params = init_mha_params(kp, n_embd, n_head, head_size, bias=True)
    pparams = prepare_params(params)

    ref = mha_reference(x, params, n_head=n_head, head_size=head_size)

    # Full-precision path (f32 MXU operands) -- tight correctness check.
    out = multi_head_attention(x, pparams, n_head=n_head, head_size=head_size,
                               mxu_dtype=jnp.float32)
    out = jax.block_until_ready(out)
    assert out.shape == (batch, seq, n_embd)
    err = float(jnp.max(jnp.abs(out - ref)))
    assert err < 1e-2, err   # residual error from the EUP approx reciprocal

    # Perf config: bf16 MXU operands with f32 accumulation / f32 softmax state.
    out_bf16 = multi_head_attention(x, pparams, n_head=n_head, head_size=head_size,
                                    mxu_dtype=jnp.bfloat16)
    out_bf16 = jax.block_until_ready(out_bf16)
    err_bf16 = float(jnp.max(jnp.abs(out_bf16 - ref)))
    assert err_bf16 < 5e-2, err_bf16

    print("KERNEL_OK")
</pallas_src>

<mosaic_0001>
module attributes {stable_mosaic.version = 11 : i64} {
  func.func @_linear_kernel(%arg0: i32, %arg1: i32, %arg2: i32, %arg3: memref<16x128xf32, #tpu.memory_space<vmem>>, %arg4: memref<128x128xf32, #tpu.memory_space<vmem>>, %arg5: memref<1x128xf32, #tpu.memory_space<vmem>>, %arg6: memref<16x128xf32, #tpu.memory_space<vmem>>, %arg7: memref<16x128xf32, #tpu.memory_space<vmem>>) attributes {dimension_semantics = [#tpu.dimension_semantics<parallel>, #tpu.dimension_semantics<parallel>, #tpu.dimension_semantics<arbitrary>], iteration_bounds = array<i64: 1, 1, 1>, scalar_prefetch = 0 : i64, scratch_operands = 1 : i64, tpu.core_type = #tpu.core_type<tc>, window_params = [{transform_indices = @transform_0, window_bounds = array<i64: 16, 128>}, {transform_indices = @transform_1, window_bounds = array<i64: 128, 128>}, {transform_indices = @transform_2, window_bounds = array<i64: 1, 128>}, {transform_indices = @transform_3, window_bounds = array<i64: 16, 128>}]} {
    %c0_i32 = arith.constant 0 : i32
    %0 = arith.cmpi eq, %arg2, %c0_i32 : i32
    %1 = arith.extui %0 : i1 to i32
    %c0_i32_0 = arith.constant 0 : i32
    %2 = arith.cmpi ne, %1, %c0_i32_0 : i32
    scf.if %2 {
      %cst_10 = arith.constant 0.000000e+00 : f32
      %12 = vector.broadcast %cst_10 : f32 to vector<16x128xf32>
      %c0_11 = arith.constant 0 : index
      %c0_12 = arith.constant 0 : index
      %13 = vector.load %arg7[%c0_11, %c0_12] : memref<16x128xf32, #tpu.memory_space<vmem>>, vector<16x128xf32>
      tpu.vector_store %arg7[%c0_11, %c0_12], %12 {strides = array<i32>} : memref<16x128xf32, #tpu.memory_space<vmem>>, vector<16x128xf32>,
    } else {
    }
    %c0 = arith.constant 0 : index
    %c0_1 = arith.constant 0 : index
    %3 = vector.load %arg7[%c0, %c0_1] : memref<16x128xf32, #tpu.memory_space<vmem>>, vector<16x128xf32>
    %c0_2 = arith.constant 0 : index
    %c0_3 = arith.constant 0 : index
    %4 = vector.load %arg3[%c0_2, %c0_3] : memref<16x128xf32, #tpu.memory_space<vmem>>, vector<16x128xf32>
    %c0_4 = arith.constant 0 : index
    %c0_5 = arith.constant 0 : index
    %5 = vector.load %arg4[%c0_4, %c0_5] : memref<128x128xf32, #tpu.memory_space<vmem>>, vector<128x128xf32>
    %cst = arith.constant dense<0.000000e+00> : vector<16x128xf32>
    %6 = tpu.matmul %4, %5, %cst {dimension_numbers = #tpu.dot_dimension_numbers<[1], [0], [0], [1], [0, 0, 1, 1], [], []>} : vector<16x128xf32>, vector<128x128xf32>, vector<16x128xf32> -> vector<16x128xf32>
    %7 = arith.addf %3, %6 : vector<16x128xf32>
    %c0_6 = arith.constant 0 : index
    %c0_7 = arith.constant 0 : index
    %8 = vector.load %arg7[%c0_6, %c0_7] : memref<16x128xf32, #tpu.memory_space<vmem>>, vector<16x128xf32>
    tpu.vector_store %arg7[%c0_6, %c0_7], %7 {strides = array<i32>} : memref<16x128xf32, #tpu.memory_space<vmem>>, vector<16x128xf32>,
    %c0_i32_8 = arith.constant 0 : i32
    %9 = arith.cmpi eq, %arg2, %c0_i32_8 : i32
    %10 = arith.extui %9 : i1 to i32
    %c0_i32_9 = arith.constant 0 : i32
    %11 = arith.cmpi ne, %10, %c0_i32_9 : i32
    scf.if %11 {
      %c0_10 = arith.constant 0 : index
      %c0_11 = arith.constant 0 : index
      %12 = vector.load %arg7[%c0_10, %c0_11] : memref<16x128xf32, #tpu.memory_space<vmem>>, vector<16x128xf32>
      %c0_12 = arith.constant 0 : index
      %c0_13 = arith.constant 0 : index
      %13 = vector.load %arg5[%c0_12, %c0_13] : memref<1x128xf32, #tpu.memory_space<vmem>>, vector<1x128xf32>
      %14 = vector.broadcast %13 : vector<1x128xf32> to vector<16x128xf32>
      %15 = arith.addf %12, %14 : vector<16x128xf32>
      %c0_14 = arith.constant 0 : index
      %c0_15 = arith.constant 0 : index
      %16 = vector.load %arg6[%c0_14, %c0_15] : memref<16x128xf32, #tpu.memory_space<vmem>>, vector<16x128xf32>
      tpu.vector_store %arg6[%c0_14, %c0_15], %15 {strides = array<i32>} : memref<16x128xf32, #tpu.memory_space<vmem>>, vector<16x128xf32>,
    } else {
    }
    return
  }
  func.func @transform_0(%arg0: i32, %arg1: i32, %arg2: i32) -> (i32, i32) {
    %c0_i32 = arith.constant 0 : i32
    return %arg0, %arg2 : i32, i32
  }
  func.func @transform_1(%arg0: i32, %arg1: i32, %arg2: i32) -> (i32, i32) {
    %c0_i32 = arith.constant 0 : i32
    return %arg2, %arg1 : i32, i32
  }
  func.func @transform_2(%arg0: i32, %arg1: i32, %arg2: i32) -> (i32, i32) {
    %c0_i32 = arith.constant 0 : i32
    %c0_i32_0 = arith.constant 0 : i32
    return %c0_i32, %arg1 : i32, i32
  }
  func.func @transform_3(%arg0: i32, %arg1: i32, %arg2: i32) -> (i32, i32) {
    %c0_i32 = arith.constant 0 : i32
    return %arg0, %arg1 : i32, i32
  }
}

</mosaic_0001>

<llo_original>
// kernel: tpu_custom_call.1
$region0: #{tpu_custom_call.1}
  #allocation0 [shape = 'u32[]', space=smem, size = 0x4, offset = 0x4, fixed_abs, tag = 'smem constant byte address 0x4 - core index']
  #allocation1 [shape = 'u32[72,128]{1,0:T(1,128)}', space=vmem, size = 0x9000, scoped, tag = 'internal scratch']
  #allocation2 [shape = 'f32[16,128]{1,0:T(8,128)}', space=vmem, size = 0x2000, scoped, tag = 'scratch operand']
  %s0 = inlined_call_operand.hbm [shape: f32[16,128], index: 0, kind: input, shape index: {}]
  %s1 = inlined_call_operand.hbm [shape: f32[128,128], index: 1, kind: input, shape index: {}]
  %s2 = inlined_call_operand.vmem [shape: f32[1,128], index: 2, kind: input, shape index: {}]
  %s3 = inlined_call_operand.hbm [shape: f32[16,128], index: 3, kind: output, shape index: {}]
  %s4 = sld [smem:[#allocation0]]
  $region38: #{tpu_custom_call.1} parent=0
    _
  %s6 = ssub.s32 1, %s4
  %s7 = scalar_select 0, %s6, %s4
  $region1: #{tpu_custom_call.1} parent=0
    #allocation3 [shape = 'u8[8192]{0}', space=vmem, size = 0x2000, scoped, tag = 'input window, operand 0, single buffered']
    #allocation4 [shape = 's32[1]{0}', space=sflag, size = 0x4, scoped, tag = 'scoped memory for tpu_custom_call.1']
    #allocation5 [shape = 's32[1]{0}', space=sflag, size = 0x4, scoped, tag = 'scoped memory for tpu_custom_call.1']
    #allocation6 [shape = 'u8[65536]{0}', space=vmem, size = 0x10000, scoped, tag = 'input window, operand 1, single buffered']
    #allocation7 [shape = 's32[1]{0}', space=sflag, size = 0x4, scoped, tag = 'scoped memory for tpu_custom_call.1']
    #allocation8 [shape = 'u8[8192]{0}', space=vmem, size = 0x2000, scoped, tag = 'output window, operand 0, single buffered']
    %8 = vsyncpa [#allocation4], 0
    %9 = vsyncpa [#allocation7], 0
    %10 = vsyncpa [#allocation5], 0
    // Predicated region
    $region2: #{tpu_custom_call.1} parent=1 // pred_check
      _
    $region3: #{tpu_custom_call.1} parent=1 // pred_check_branch
      %12 = sbr.rel (0) target = $region5
    $region4: #{tpu_custom_call.1} parent=1 // pred_region
      %14 = vsyncadd [#allocation4], 0
      %s15 = sshll.u32 %s0, 4
      %s16 = int_to_ptr.hbm [resolvable:$true] %s15
      %s17 = sshll.u32 [#allocation3], 4
      %s18 = int_to_ptr.vmem [resolvable:$true] %s17
      %23 = dma.hbm_to_vmem [thread:$0]  %s16, 256, %s18, [#allocation4], 128, 128, 8
    $region5: #{tpu_custom_call.1} parent=1 // pred_fallthru
      _
    // Predicated region
    $region6: #{tpu_custom_call.1} parent=1 // pred_check
      _
    $region7: #{tpu_custom_call.1} parent=1 // pred_check_branch
      %25 = sbr.rel (0) target = $region9
    $region8: #{tpu_custom_call.1} parent=1 // pred_region
      %27 = vsyncadd [#allocation7], 0
      %s28 = sshll.u32 %s1, 4
      %s29 = int_to_ptr.hbm [resolvable:$true] %s28
      %s30 = sshll.u32 [#allocation6], 4
      %s31 = int_to_ptr.vmem [resolvable:$true] %s30
      %36 = dma.hbm_to_vmem [thread:$0]  %s29, 2048, %s31, [#allocation7], 128, 128, 8
    $region9: #{tpu_custom_call.1} parent=1 // pred_fallthru
      _
    // Predicated region
    $region10: #{tpu_custom_call.1} parent=1 // pred_check
      _
    $region11: #{tpu_custom_call.1} parent=1 // pred_check_branch
      %38 = sbr.rel (0) target = $region13
    $region12: #{tpu_custom_call.1} parent=1 // pred_region
      _
    $region13: #{tpu_custom_call.1} parent=1 // pred_fallthru
      _
    // Predicated region
    $region14: #{tpu_custom_call.1} parent=1 // pred_check
      _
    $region15: #{tpu_custom_call.1} parent=1 // pred_check_branch
      %40 = sbr.rel (0) target = $region17
    $region16: #{tpu_custom_call.1} parent=1 // pred_region
      %42 = dma.done [#allocation4], 256
    $region17: #{tpu_custom_call.1} parent=1 // pred_fallthru
      _
    // Predicated region
    $region18: #{tpu_custom_call.1} parent=1 // pred_check
      _
    $region19: #{tpu_custom_call.1} parent=1 // pred_check_branch
      %44 = sbr.rel (0) target = $region21
    $region20: #{tpu_custom_call.1} parent=1 // pred_region
      %46 = dma.done [#allocation7], 2048
    $region21: #{tpu_custom_call.1} parent=1 // pred_fallthru
      _
    %p47 = scmp.eq.s32.totalorder 0, 0
    // Predicated region
    $region22: #{tpu_custom_call.1} parent=1 // pred_check
      %p48 = pneg %p47
    $region23: #{tpu_custom_call.1} parent=1 // pred_check_branch
      %50 = sbr.rel (%p48) target = $region25
    $region24: #{tpu_custom_call.1} parent=1 // pred_region
      %51 = vst [vmem:[#allocation2] sm:$0xff] 0.0
      %52 = vst [vmem:[#allocation2 + $0x8] sm:$0xff] 0.0
    $region25: #{tpu_custom_call.1} parent=1 // pred_fallthru
      _
    %v53 = vld [vmem:[#allocation2] sm:$0xff]
    %v54 = vld [vmem:[#allocation2 + $0x8] sm:$0xff]
    %v55 = vld [vmem:[#allocation3] sm:$0xff]
    %v56 = vld [vmem:[#allocation3 + $0x8] sm:$0xff]
    %v57 = vld [vmem:[#allocation6] sm:$0xff]
    %v58 = vld [vmem:[#allocation6 + $0x8] sm:$0xff]
    %v59 = vld [vmem:[#allocation6 + $0x10] sm:$0xff]
    %v60 = vld [vmem:[#allocation6 + $0x18] sm:$0xff]
    %v61 = vld [vmem:[#allocation6 + $0x20] sm:$0xff]
    %v62 = vld [vmem:[#allocation6 + $0x28] sm:$0xff]
    %v63 = vld [vmem:[#allocation6 + $0x30] sm:$0xff]
    %v64 = vld [vmem:[#allocation6 + $0x38] sm:$0xff]
    %v65 = vld [vmem:[#allocation6 + $0x40] sm:$0xff]
    %v66 = vld [vmem:[#allocation6 + $0x48] sm:$0xff]
    %v67 = vld [vmem:[#allocation6 + $0x50] sm:$0xff]
    %v68 = vld [vmem:[#allocation6 + $0x58] sm:$0xff]
    %v69 = vld [vmem:[#allocation6 + $0x60] sm:$0xff]
    %v70 = vld [vmem:[#allocation6 + $0x68] sm:$0xff]
    %v71 = vld [vmem:[#allocation6 + $0x70] sm:$0xff]
    %v72 = vld [vmem:[#allocation6 + $0x78] sm:$0xff]
    %73 = vmatpush.msra.mxu0 %v72
    %74 = vmatpush.msra.mxu0 %v71
    %75 = vmatpush.msra.mxu0 %v70
    %76 = vmatpush.msra.mxu0 %v69
    %77 = vmatpush.msra.mxu0 %v68
    %78 = vmatpush.msra.mxu0 %v67
    %79 = vmatpush.msra.mxu0 %v66
    %80 = vmatpush.msra.mxu0 %v65
    %81 = vmatpush.msra.mxu0 %v64
    %82 = vmatpush.msra.mxu0 %v63
    %83 = vmatpush.msra.mxu0 %v62
    %84 = vmatpush.msra.mxu0 %v61
    %85 = vmatpush.msra.mxu0 %v60
    %86 = vmatpush.msra.mxu0 %v59
    %87 = vmatpush.msra.mxu0 %v58
    %88 = vmatpush.msra.mxu0 %v57
    %89 = vmatmul.f32.gmra.mxu0 %v55
    %v90 = vpop.f32.mrf.mxu0
    %v91 = vadd.f32 0.0, %v90
    %92 = vmatmul.f32.gmra.mxu0 %v56
    %v93 = vpop.f32.mrf.mxu0
    %v94 = vadd.f32 0.0, %v93
    %95 = vdwg.mxu0
    %v96 = vadd.f32 %v53, %v91
    %v97 = vadd.f32 %v54, %v94
    %98 = vst [vmem:[#allocation2] sm:$0xff] %v96
    %99 = vst [vmem:[#allocation2 + $0x8] sm:$0xff] %v97
    // Predicated region
    $region26: #{tpu_custom_call.1} parent=1 // pred_check
      %p100 = pneg %p47
    $region27: #{tpu_custom_call.1} parent=1 // pred_check_branch
      %102 = sbr.rel (%p100) target = $region29
    $region28: #{tpu_custom_call.1} parent=1 // pred_region
      %v103 = vld [vmem:[#allocation2] sm:$0xff]
      %v104 = vld [vmem:[#allocation2 + $0x8] sm:$0xff]
      %v105 = vld [vmem:[%s2] sm:$0x1]
      %v107 = vperm.slane %v105, 0
      %v109 = vadd.f32 %v103, %v107
      %v110 = vadd.f32 %v104, %v107
      %111 = vst [vmem:[#allocation8] sm:$0xff] %v109
      %112 = vst [vmem:[#allocation8 + $0x8] sm:$0xff] %v110
    $region29: #{tpu_custom_call.1} parent=1 // pred_fallthru
      _
    // Predicated region
    $region30: #{tpu_custom_call.1} parent=1 // pred_check
      _
    $region31: #{tpu_custom_call.1} parent=1 // pred_check_branch
      %114 = sbr.rel (0) target = $region33
    $region32: #{tpu_custom_call.1} parent=1 // pred_region
      %116 = vsyncadd [#allocation5], 0
      %s117 = sshll.u32 [#allocation8], 4
      %s118 = int_to_ptr.vmem [resolvable:$true] %s117
      %s119 = sshll.u32 %s3, 4
      %s120 = int_to_ptr.hbm [resolvable:$true] %s119
      %125 = dma.vmem_to_hbm [thread:$0]  %s118, 256, %s120, [#allocation5], 128, 128, 8
    $region33: #{tpu_custom_call.1} parent=1 // pred_fallthru
      _
    // Predicated region
    $region34: #{tpu_custom_call.1} parent=1 // pred_check
      _
    $region35: #{tpu_custom_call.1} parent=1 // pred_check_branch
      %127 = sbr.rel (0) target = $region37
    $region36: #{tpu_custom_call.1} parent=1 // pred_region
      %129 = dma.done [#allocation5], 256
    $region37: #{tpu_custom_call.1} parent=1 // pred_fallthru
      _
    %130 = vsyncpa [#allocation4], 1
    %131 = vsyncpa [#allocation7], 1
    %132 = vsyncpa [#allocation5], 1

</llo_original>
